<compile_context>
chip_gen: v7x
topology: tpu7x:2x2x1
jax: 0.10.0
libtpu: 0.0.40
codegen_flags: <defaults>
</compile_context>

<pallas_src>
import jax
import jax.numpy as jnp
import numpy as np
from jax.experimental import pallas as pl
from jax.experimental.pallas import tpu as pltpu

ALPHA = 20.0   # matches OriBinLoss(alpha=20)
MARGIN = 0.5   # matches OriBinLoss(margin=0.5)
BASE = 0.9     # max(sim.max() - 0.1, MARGIN + 0.2) == 0.9 for L2-normalized rows

_HW_VMEM_BYTES = None


def _vmem_capacity_bytes():
    """Generation-aware VMEM capacity (128 MiB v5e/v6e, 64 MiB v7x)."""
    global _HW_VMEM_BYTES
    if _HW_VMEM_BYTES is None:
        try:
            _HW_VMEM_BYTES = int(pltpu.get_tpu_info().vmem_capacity_bytes)
        except Exception:
            _HW_VMEM_BYTES = 64 * 1024 * 1024   # conservative: v7x per-TC VMEM
    return _HW_VMEM_BYTES


def _pick_block(n, d, budget):
    """Largest row block that divides n, keeps the main kernel's live set under
    `budget`, and (preferably) yields >= 2 grid steps so both v7x TensorCores
    get work under dimension_semantics=('parallel',)."""
    def fits(bm):
        live = 12 * bm * n * 4       # ~12 live (bm, n) f32 temporaries (sim, masks, softplus chain)
        resident = 2 * 2 * d * n     # double-buffered bf16 (d, n) resident xn_t
        rows = 2 * 2 * bm * d        # double-buffered bf16 (bm, d) row block
        return live + resident + rows <= budget
    cands = [c for c in (1024, 512, 256, 128, 64, 32, 16, 8) if n % c == 0]
    for need_multi in (True, False):
        for bm in cands:
            if need_multi and n // bm < 2:
                continue
            if fits(bm):
                return bm
    return n   # untiled fallback (block == full array dims)


# --------------------------------------------------------------------------
# Kernel 1: L2-normalize rows, store bf16 (x / ||x|| via one rsqrt on the EUP)
# --------------------------------------------------------------------------
def _normalize_kernel(x_ref, xn_ref):
    x = x_ref[...].astype(jnp.float32)
    inv = jax.lax.rsqrt(jnp.sum(x * x, axis=1, keepdims=True) + 1e-12)
    xn_ref[...] = (x * inv).astype(xn_ref.dtype)


# --------------------------------------------------------------------------
# Kernel 2: main pass — selections, per-row loss and "no kept negatives" flag
# --------------------------------------------------------------------------
def _main_kernel(xr_ref, xat_ref, tc_ref, tr_ref, loss_ref, c_ref):
    f32 = jnp.float32

    # (bm, n) similarity block: bf16 operands, f32 accumulation on the MXU,
    # canonical (M,K)@(K,N) against the pre-transposed resident copy.
    sim = jax.lax.dot_general(xr_ref[...], xat_ref[...],
                              (((1,), (0,)), ((), ())),
                              preferred_element_type=f32)

    same = tc_ref[...] == tr_ref[...]         # (bm, n); diagonal included (no-op here)
    neg = jnp.logical_not(same)

    big = f32(1e30)
    min_pos = jnp.min(jnp.where(same, sim, big), axis=1, keepdims=True)    # (bm, 1)
    max_neg = jnp.max(jnp.where(neg, sim, -big), axis=1, keepdims=True)    # (bm, 1)

    # Negatives: keep negs > min_pos - 0.05; fallback to the hardest negative.
    neg_sel = jnp.logical_and(neg, sim > (min_pos - 0.05))
    neg_cnt = jnp.sum(neg_sel.astype(f32), axis=1, keepdims=True)
    neg_arg = jnp.where(neg_sel, sim, -1000.0)              # masked lanes -> softplus == 0
    neg_sum = jnp.sum(jnp.log1p(jnp.exp(ALPHA * (neg_arg - MARGIN))),
                      axis=1, keepdims=True)
    neg_fb = jnp.log1p(jnp.exp(ALPHA * (max_neg - MARGIN)))
    neg_loss = jnp.where(neg_cnt > 0.0, neg_sum / jnp.maximum(neg_cnt, 1.0), neg_fb)

    # Positives: keep pos < base (= 0.9); fallback to the easiest positive.
    pos_sel = jnp.logical_and(same, sim < BASE)
    pos_cnt = jnp.sum(pos_sel.astype(f32), axis=1, keepdims=True)
    pos_arg = jnp.where(pos_sel, sim, 1000.0)               # masked lanes -> softplus == 0
    pos_sum = jnp.sum(jnp.log1p(jnp.exp(-2.0 * (pos_arg - MARGIN))),
                      axis=1, keepdims=True)
    pos_fb = jnp.log1p(jnp.exp(-2.0 * (min_pos - MARGIN)))
    pos_loss = jnp.where(pos_cnt > 0.0, pos_sum / jnp.maximum(pos_cnt, 1.0), pos_fb)

    loss_ref[...] = pos_loss + neg_loss
    c_ref[...] = jnp.where(neg_cnt > 0.0, 0.0, 1.0)         # rows without kept negatives


# --------------------------------------------------------------------------
# Wrapper
# --------------------------------------------------------------------------
@jax.jit
def ori_bin_loss(inputs, targets):
    """inputs: float [N, D]; targets: int [N]. Returns (loss, prec, pos_d, neg_d)."""
    n, d = inputs.shape
    cap = _vmem_capacity_bytes()
    bm = _pick_block(n, d, cap // 4)
    g = n // bm

    cparams = pltpu.CompilerParams(
        dimension_semantics=("parallel",),
        vmem_limit_bytes=int(cap * 3 // 4))

    # 1) normalize -> bf16 embeddings (feeds the bf16 MXU matmul).
    xn = pl.pallas_call(
        _normalize_kernel,
        out_shape=jax.ShapeDtypeStruct((n, d), jnp.bfloat16),
        grid=(g,),
        in_specs=[pl.BlockSpec((bm, d), lambda i: (i, 0))],
        out_specs=pl.BlockSpec((bm, d), lambda i: (i, 0)),
        compiler_params=cparams,
    )(inputs)

    # Pre-transposed RHS (single XLA transpose) so the kernel never transposes
    # the grid-invariant (N, D) array on the XLU.
    xn_t = xn.T                                           # (d, n) bf16

    t_col = targets.astype(jnp.int32).reshape(n, 1)
    t_row = targets.astype(jnp.int32).reshape(1, n)

    # 2) main pass: per-row loss + per-row "no kept negatives" flag.
    loss_r, c_r = pl.pallas_call(
        _main_kernel,
        out_shape=(jax.ShapeDtypeStruct((n, 1), jnp.float32),
                   jax.ShapeDtypeStruct((n, 1), jnp.float32)),
        grid=(g,),
        in_specs=[pl.BlockSpec((bm, d), lambda i: (i, 0)),   # xn row block (bf16)
                  pl.BlockSpec((d, n), lambda i: (0, 0)),    # xn^T, grid-invariant
                  pl.BlockSpec((bm, 1), lambda i: (i, 0)),   # targets column block
                  pl.BlockSpec((1, n), lambda i: (0, 0))],   # targets row (full)
        out_specs=(pl.BlockSpec((bm, 1), lambda i: (i, 0)),
                   pl.BlockSpec((bm, 1), lambda i: (i, 0))),
        compiler_params=cparams,
    )(xn, xn_t, t_col, t_row)

    nf = jnp.float32(n)
    loss = jnp.sum(loss_r) / nf
    prec = jnp.sum(c_r) / nf

    # pos_d / neg_d: masked means of sim, hoisted to O(N*D) wrapper math.
    #   sum over same-class pairs  = sum_c ||sum_{i in c} xn_i||^2
    #   sum over all pairs         = ||sum_i xn_i||^2
    #   sum over the diagonal      = sum_i ||xn_i||^2
    xn32 = xn.astype(jnp.float32)
    _, inv = jnp.unique(targets.astype(jnp.int32), size=n, return_inverse=True)
    class_sum = jax.ops.segment_sum(xn32, inv, num_segments=n)                  # (n, d)
    class_cnt = jax.ops.segment_sum(jnp.ones((n,), jnp.float32), inv, num_segments=n)
    sum_same = jnp.sum(class_sum * class_sum)
    sum_diag = jnp.sum(xn32 * xn32)
    col_sum = jnp.sum(xn32, axis=0)
    sum_all = jnp.sum(col_sum * col_sum)
    same_pairs = jnp.sum(class_cnt * class_cnt)
    pos_d = (sum_same - sum_diag) / jnp.maximum(same_pairs - nf, 1.0)
    neg_d = (sum_all - sum_same) / jnp.maximum(nf * nf - same_pairs, 1.0)
    return loss, prec, pos_d, neg_d


# --------------------------------------------------------------------------
# Reference (literal numpy re-implementation of the PyTorch forward)
# --------------------------------------------------------------------------
def _reference_numpy(x, t, alpha=ALPHA, margin=MARGIN):
    x = np.asarray(x, np.float32)
    t = np.asarray(t)
    n = x.shape[0]
    xn = x / np.linalg.norm(x, axis=1, keepdims=True)
    sim = xn @ xn.T
    base = max(sim.max() - 0.1, margin + 0.2)
    loss, c = 0.0, 0
    pos_all, neg_all = [], []
    for i in range(n):
        pos = np.sort(sim[i][(t == t[i]) & (np.arange(n) != i)])
        neg = np.sort(sim[i][t != t[i]])
        pos_all.append(pos)
        neg_all.append(neg)
        neg_sel = neg[neg > pos[0] - 0.05]
        pos_sel = pos[pos < base]
        if len(neg_sel) < 1:
            c += 1
            neg_sel = neg[-1:]
        if len(pos_sel) < 1:
            pos_sel = pos[:1]
        pos_loss = np.mean(np.log1p(np.exp(-2.0 * (pos_sel - margin))))
        neg_loss = np.mean(np.log1p(np.exp(alpha * (neg_sel - margin))))
        loss += pos_loss + neg_loss
    return (loss / n, c / n,
            float(np.mean(np.concatenate(pos_all))),
            float(np.mean(np.concatenate(neg_all))))


if __name__ == "__main__":
    # Small deterministic example: 8 embeddings of dim 32, 2 classes x 4 instances
    # (matches the "num_instances" structure the PyTorch resize() assumes).
    key = jax.random.PRNGKey(0)
    N, D = 8, 32
    inputs = jax.random.normal(key, (N, D), dtype=jnp.float32)
    targets = jnp.array([0, 0, 0, 0, 1, 1, 1, 1], dtype=jnp.int32)

    loss, prec, pos_d, neg_d = ori_bin_loss(inputs, targets)
    jax.block_until_ready((loss, prec, pos_d, neg_d))

    ref = _reference_numpy(np.asarray(inputs), np.asarray(targets))
    got = (float(loss), float(prec), float(pos_d), float(neg_d))
    # Tolerance accounts for the (intentional) bf16 similarity matmul
    # (errors ~1e-3 in practice); hard thresholds may rarely flip near-boundary pairs.
    np.testing.assert_allclose(got, ref, rtol=2e-2, atol=2e-2)

    print("KERNEL_OK")
</pallas_src>

<mosaic_0001>
module attributes {stable_mosaic.version = 11 : i64} {
  func.func @_normalize_kernel(%arg0: i32, %arg1: memref<8x32xf32, #tpu.memory_space<vmem>>, %arg2: memref<8x32xbf16, #tpu.memory_space<vmem>>) attributes {dimension_semantics = [#tpu.dimension_semantics<parallel>], iteration_bounds = array<i64: 1>, scalar_prefetch = 0 : i64, scratch_operands = 0 : i64, tpu.core_type = #tpu.core_type<tc>, window_params = [{transform_indices = @transform_0, window_bounds = array<i64: 8, 32>}, {transform_indices = @transform_1, window_bounds = array<i64: 8, 32>}]} {
    %c0 = arith.constant 0 : index
    %c0_0 = arith.constant 0 : index
    %0 = vector.load %arg1[%c0, %c0_0] : memref<8x32xf32, #tpu.memory_space<vmem>>, vector<8x32xf32>
    %1 = arith.mulf %0, %0 : vector<8x32xf32>
    %cst = arith.constant dense<0.000000e+00> : vector<8xf32>
    %2 = vector.multi_reduction <add>, %1, %cst [1] : vector<8x32xf32> to vector<8xf32>
    %3 = vector.shape_cast %2 : vector<8xf32> to vector<8x1xf32>
    %cst_1 = arith.constant 9.99999996E-13 : f32
    %4 = vector.broadcast %cst_1 : f32 to vector<8x1xf32>
    %5 = arith.addf %3, %4 : vector<8x1xf32>
    %6 = math.rsqrt %5 : vector<8x1xf32>
    %7 = vector.broadcast %6 : vector<8x1xf32> to vector<8x32xf32>
    %8 = arith.mulf %0, %7 : vector<8x32xf32>
    %9 = arith.truncf %8 : vector<8x32xf32> to vector<8x32xbf16>
    %c0_2 = arith.constant 0 : index
    %c0_3 = arith.constant 0 : index
    %10 = vector.load %arg2[%c0_2, %c0_3] : memref<8x32xbf16, #tpu.memory_space<vmem>>, vector<8x32xbf16>
    tpu.vector_store %arg2[%c0_2, %c0_3], %9 {strides = array<i32>} : memref<8x32xbf16, #tpu.memory_space<vmem>>, vector<8x32xbf16>,
    return
  }
  func.func @transform_0(%arg0: i32) -> (i32, i32) {
    %c0_i32 = arith.constant 0 : i32
    %c0_i32_0 = arith.constant 0 : i32
    return %arg0, %c0_i32 : i32, i32
  }
  func.func @transform_1(%arg0: i32) -> (i32, i32) {
    %c0_i32 = arith.constant 0 : i32
    %c0_i32_0 = arith.constant 0 : i32
    return %arg0, %c0_i32 : i32, i32
  }
}

module attributes {stable_mosaic.version = 11 : i64} {
  func.func @_main_kernel(%arg0: i32, %arg1: memref<8x32xbf16, #tpu.memory_space<vmem>>, %arg2: memref<32x8xbf16, #tpu.memory_space<vmem>>, %arg3: memref<8x1xi32, #tpu.memory_space<vmem>>, %arg4: memref<1x8xi32, #tpu.memory_space<vmem>>, %arg5: memref<8x1xf32, #tpu.memory_space<vmem>>, %arg6: memref<8x1xf32, #tpu.memory_space<vmem>>) attributes {dimension_semantics = [#tpu.dimension_semantics<parallel>], iteration_bounds = array<i64: 1>, scalar_prefetch = 0 : i64, scratch_operands = 0 : i64, tpu.core_type = #tpu.core_type<tc>, window_params = [{transform_indices = @transform_0, window_bounds = array<i64: 8, 32>}, {pipeline_mode = #tpu.pipeline_mode<synchronous>, transform_indices = @transform_1, window_bounds = array<i64: 32, 8>}, {transform_indices = @transform_2, window_bounds = array<i64: 8, 1>}, {pipeline_mode = #tpu.pipeline_mode<synchronous>, transform_indices = @transform_3, window_bounds = array<i64: 1, 8>}, {transform_indices = @transform_4, window_bounds = array<i64: 8, 1>}, {transform_indices = @transform_5, window_bounds = array<i64: 8, 1>}]} {
    %c0 = arith.constant 0 : index
    %c0_0 = arith.constant 0 : index
    %0 = vector.load %arg1[%c0, %c0_0] : memref<8x32xbf16, #tpu.memory_space<vmem>>, vector<8x32xbf16>
    %c0_1 = arith.constant 0 : index
    %c0_2 = arith.constant 0 : index
    %1 = vector.load %arg2[%c0_1, %c0_2] : memref<32x8xbf16, #tpu.memory_space<vmem>>, vector<32x8xbf16>
    %cst = arith.constant dense<0.000000e+00> : vector<8x8xf32>
    %2 = tpu.matmul %0, %1, %cst {dimension_numbers = #tpu.dot_dimension_numbers<[1], [0], [0], [1], [0, 0, 1, 1], [], []>} : vector<8x32xbf16>, vector<32x8xbf16>, vector<8x8xf32> -> vector<8x8xf32>
    %c0_3 = arith.constant 0 : index
    %c0_4 = arith.constant 0 : index
    %3 = vector.load %arg3[%c0_3, %c0_4] : memref<8x1xi32, #tpu.memory_space<vmem>>, vector<8x1xi32>
    %c0_5 = arith.constant 0 : index
    %c0_6 = arith.constant 0 : index
    %4 = vector.load %arg4[%c0_5, %c0_6] : memref<1x8xi32, #tpu.memory_space<vmem>>, vector<1x8xi32>
    %5 = vector.broadcast %3 : vector<8x1xi32> to vector<8x8xi32>
    %6 = vector.broadcast %4 : vector<1x8xi32> to vector<8x8xi32>
    %7 = arith.cmpi eq, %5, %6 : vector<8x8xi32>
    %cst_7 = arith.constant dense<true> : vector<8x8xi1>
    %8 = arith.xori %7, %cst_7 : vector<8x8xi1>
    %cst_8 = arith.constant 1.000000e+30 : f32
    %9 = vector.broadcast %cst_8 : f32 to vector<8x8xf32>
    %10 = arith.select %7, %2, %9 : vector<8x8xi1>, vector<8x8xf32>
    %cst_9 = arith.constant dense<0x7F800000> : vector<8xf32>
    %11 = vector.multi_reduction <minimumf>, %10, %cst_9 [1] : vector<8x8xf32> to vector<8xf32>
    %12 = vector.shape_cast %11 : vector<8xf32> to vector<8x1xf32>
    %cst_10 = arith.constant 0.000000e+00 : f32
    %cst_11 = arith.constant 1.000000e+30 : f32
    %13 = arith.subf %cst_10, %cst_11 : f32
    %14 = vector.broadcast %13 : f32 to vector<8x8xf32>
    %15 = arith.select %8, %2, %14 : vector<8x8xi1>, vector<8x8xf32>
    %cst_12 = arith.constant dense<0xFF800000> : vector<8xf32>
    %16 = vector.multi_reduction <maximumf>, %15, %cst_12 [1] : vector<8x8xf32> to vector<8xf32>
    %17 = vector.shape_cast %16 : vector<8xf32> to vector<8x1xf32>
    %cst_13 = arith.constant 5.000000e-02 : f32
    %18 = vector.broadcast %cst_13 : f32 to vector<8x1xf32>
    %19 = arith.subf %12, %18 : vector<8x1xf32>
    %20 = vector.broadcast %19 : vector<8x1xf32> to vector<8x8xf32>
    %21 = arith.cmpf ogt, %2, %20 : vector<8x8xf32>
    %22 = arith.andi %8, %21 : vector<8x8xi1>
    %23 = arith.extui %22 : vector<8x8xi1> to vector<8x8xi32>
    %24 = arith.sitofp %23 : vector<8x8xi32> to vector<8x8xf32>
    %cst_14 = arith.constant dense<0.000000e+00> : vector<8xf32>
    %25 = vector.multi_reduction <add>, %24, %cst_14 [1] : vector<8x8xf32> to vector<8xf32>
    %26 = vector.shape_cast %25 : vector<8xf32> to vector<8x1xf32>
    %cst_15 = arith.constant -1.000000e+03 : f32
    %27 = vector.broadcast %cst_15 : f32 to vector<8x8xf32>
    %28 = arith.select %22, %2, %27 : vector<8x8xi1>, vector<8x8xf32>
    %cst_16 = arith.constant 5.000000e-01 : f32
    %29 = vector.broadcast %cst_16 : f32 to vector<8x8xf32>
    %30 = arith.subf %28, %29 : vector<8x8xf32>
    %cst_17 = arith.constant 2.000000e+01 : f32
    %31 = vector.broadcast %cst_17 : f32 to vector<8x8xf32>
    %32 = arith.mulf %31, %30 : vector<8x8xf32>
    %33 = math.exp %32 : vector<8x8xf32>
    %34 = math.log1p %33 : vector<8x8xf32>
    %cst_18 = arith.constant dense<0.000000e+00> : vector<8xf32>
    %35 = vector.multi_reduction <add>, %34, %cst_18 [1] : vector<8x8xf32> to vector<8xf32>
    %36 = vector.shape_cast %35 : vector<8xf32> to vector<8x1xf32>
    %cst_19 = arith.constant 5.000000e-01 : f32
    %37 = vector.broadcast %cst_19 : f32 to vector<8x1xf32>
    %38 = arith.subf %17, %37 : vector<8x1xf32>
    %cst_20 = arith.constant 2.000000e+01 : f32
    %39 = vector.broadcast %cst_20 : f32 to vector<8x1xf32>
    %40 = arith.mulf %39, %38 : vector<8x1xf32>
    %41 = math.exp %40 : vector<8x1xf32>
    %42 = math.log1p %41 : vector<8x1xf32>
    %cst_21 = arith.constant 0.000000e+00 : f32
    %43 = vector.broadcast %cst_21 : f32 to vector<8x1xf32>
    %44 = arith.cmpf ogt, %26, %43 : vector<8x1xf32>
    %cst_22 = arith.constant 1.000000e+00 : f32
    %45 = vector.broadcast %cst_22 : f32 to vector<8x1xf32>
    %46 = arith.maximumf %26, %45 : vector<8x1xf32>
    %47 = arith.divf %36, %46 : vector<8x1xf32>
    %48 = arith.select %44, %47, %42 : vector<8x1xi1>, vector<8x1xf32>
    %cst_23 = arith.constant 0.899999976 : f32
    %49 = vector.broadcast %cst_23 : f32 to vector<8x8xf32>
    %50 = arith.cmpf olt, %2, %49 : vector<8x8xf32>
    %51 = arith.andi %7, %50 : vector<8x8xi1>
    %52 = arith.extui %51 : vector<8x8xi1> to vector<8x8xi32>
    %53 = arith.sitofp %52 : vector<8x8xi32> to vector<8x8xf32>
    %cst_24 = arith.constant dense<0.000000e+00> : vector<8xf32>
    %54 = vector.multi_reduction <add>, %53, %cst_24 [1] : vector<8x8xf32> to vector<8xf32>
    %55 = vector.shape_cast %54 : vector<8xf32> to vector<8x1xf32>
    %cst_25 = arith.constant 1.000000e+03 : f32
    %56 = vector.broadcast %cst_25 : f32 to vector<8x8xf32>
    %57 = arith.select %51, %2, %56 : vector<8x8xi1>, vector<8x8xf32>
    %cst_26 = arith.constant 5.000000e-01 : f32
    %58 = vector.broadcast %cst_26 : f32 to vector<8x8xf32>
    %59 = arith.subf %57, %58 : vector<8x8xf32>
    %cst_27 = arith.constant -2.000000e+00 : f32
    %60 = vector.broadcast %cst_27 : f32 to vector<8x8xf32>
    %61 = arith.mulf %60, %59 : vector<8x8xf32>
    %62 = math.exp %61 : vector<8x8xf32>
    %63 = math.log1p %62 : vector<8x8xf32>
    %cst_28 = arith.constant dense<0.000000e+00> : vector<8xf32>
    %64 = vector.multi_reduction <add>, %63, %cst_28 [1] : vector<8x8xf32> to vector<8xf32>
    %65 = vector.shape_cast %64 : vector<8xf32> to vector<8x1xf32>
    %cst_29 = arith.constant 5.000000e-01 : f32
    %66 = vector.broadcast %cst_29 : f32 to vector<8x1xf32>
    %67 = arith.subf %12, %66 : vector<8x1xf32>
    %cst_30 = arith.constant -2.000000e+00 : f32
    %68 = vector.broadcast %cst_30 : f32 to vector<8x1xf32>
    %69 = arith.mulf %68, %67 : vector<8x1xf32>
    %70 = math.exp %69 : vector<8x1xf32>
    %71 = math.log1p %70 : vector<8x1xf32>
    %cst_31 = arith.constant 0.000000e+00 : f32
    %72 = vector.broadcast %cst_31 : f32 to vector<8x1xf32>
    %73 = arith.cmpf ogt, %55, %72 : vector<8x1xf32>
    %cst_32 = arith.constant 1.000000e+00 : f32
    %74 = vector.broadcast %cst_32 : f32 to vector<8x1xf32>
    %75 = arith.maximumf %55, %74 : vector<8x1xf32>
    %76 = arith.divf %65, %75 : vector<8x1xf32>
    %77 = arith.select %73, %76, %71 : vector<8x1xi1>, vector<8x1xf32>
    %78 = arith.addf %77, %48 : vector<8x1xf32>
    %c0_33 = arith.constant 0 : index
    %c0_34 = arith.constant 0 : index
    %79 = vector.load %arg5[%c0_33, %c0_34] : memref<8x1xf32, #tpu.memory_space<vmem>>, vector<8x1xf32>
    tpu.vector_store %arg5[%c0_33, %c0_34], %78 {strides = array<i32>} : memref<8x1xf32, #tpu.memory_space<vmem>>, vector<8x1xf32>,
    %cst_35 = arith.constant 0.000000e+00 : f32
    %80 = vector.broadcast %cst_35 : f32 to vector<8x1xf32>
    %81 = arith.cmpf ogt, %26, %80 : vector<8x1xf32>
    %cst_36 = arith.constant 0.000000e+00 : f32
    %cst_37 = arith.constant 1.000000e+00 : f32
    %82 = vector.broadcast %cst_36 : f32 to vector<8x1xf32>
    %83 = vector.broadcast %cst_37 : f32 to vector<8x1xf32>
    %84 = arith.select %81, %82, %83 : vector<8x1xi1>, vector<8x1xf32>
    %c0_38 = arith.constant 0 : index
    %c0_39 = arith.constant 0 : index
    %85 = vector.load %arg6[%c0_38, %c0_39] : memref<8x1xf32, #tpu.memory_space<vmem>>, vector<8x1xf32>
    tpu.vector_store %arg6[%c0_38, %c0_39], %84 {strides = array<i32>} : memref<8x1xf32, #tpu.memory_space<vmem>>, vector<8x1xf32>,
    return
  }
  func.func @transform_0(%arg0: i32) -> (i32, i32) {
    %c0_i32 = arith.constant 0 : i32
    %c0_i32_0 = arith.constant 0 : i32
    return %arg0, %c0_i32 : i32, i32
  }
  func.func @transform_1(%arg0: i32) -> (i32, i32) {
    %c0_i32 = arith.constant 0 : i32
    %c0_i32_0 = arith.constant 0 : i32
    %c0_i32_1 = arith.constant 0 : i32
    return %c0_i32, %c0_i32_0 : i32, i32
  }
  func.func @transform_2(%arg0: i32) -> (i32, i32) {
    %c0_i32 = arith.constant 0 : i32
    %c0_i32_0 = arith.constant 0 : i32
    return %arg0, %c0_i32 : i32, i32
  }
  func.func @transform_3(%arg0: i32) -> (i32, i32) {
    %c0_i32 = arith.constant 0 : i32
    %c0_i32_0 = arith.constant 0 : i32
    %c0_i32_1 = arith.constant 0 : i32
    return %c0_i32, %c0_i32_0 : i32, i32
  }
  func.func @transform_4(%arg0: i32) -> (i32, i32) {
    %c0_i32 = arith.constant 0 : i32
    %c0_i32_0 = arith.constant 0 : i32
    return %arg0, %c0_i32 : i32, i32
  }
  func.func @transform_5(%arg0: i32) -> (i32, i32) {
    %c0_i32 = arith.constant 0 : i32
    %c0_i32_0 = arith.constant 0 : i32
    return %arg0, %c0_i32 : i32, i32
  }
}

</mosaic_0001>

<llo_original>
// kernel: ori_bin_loss.2
$region0: #{ori_bin_loss.2}
  #allocation0 [shape = 'u32[]', space=smem, size = 0x4, offset = 0x4, fixed_abs, tag = 'smem constant byte address 0x4 - core index']
  #allocation1 [shape = 'u32[144,128]{1,0:T(1,128)}', space=vmem, size = 0x12000, scoped, tag = 'internal scratch']
  %s0 = inlined_call_operand.hbm [shape: f32[8,32], index: 0, kind: input, shape index: {}]
  %s1 = inlined_call_operand.vmem [shape: bf16[8,32], index: 1, kind: output, shape index: {}]
  %s2 = sld [smem:[#allocation0]]
  $region18: #{ori_bin_loss.2} parent=0
    _
  %s4 = ssub.s32 1, %s2
  %s5 = scalar_select 0, %s4, %s2
  $region1: #{ori_bin_loss.2} parent=0
    #allocation2 [shape = 'u8[4096]{0}', space=vmem, size = 0x1000, scoped, tag = 'input window, operand 0, single buffered']
    #allocation3 [shape = 's32[1]{0}', space=sflag, size = 0x4, scoped, tag = 'scoped memory for ori_bin_loss.2']
    %6 = vsyncpa [#allocation3], 0
    // Predicated region
    $region2: #{ori_bin_loss.2} parent=1 // pred_check
      _
    $region3: #{ori_bin_loss.2} parent=1 // pred_check_branch
      %8 = sbr.rel (0) target = $region5
    $region4: #{ori_bin_loss.2} parent=1 // pred_region
      %s10 = ssub.s32 128, 128
      %11 = vsyncadd [#allocation3], %s10
      %s13 = sshll.u32 [#allocation2], 4
      %s14 = int_to_ptr.vmem [resolvable:$true] %s13
      %16 = dma.hbm_to_vmem [thread:$0]  %s0, 128, %s14, [#allocation3]
    $region5: #{ori_bin_loss.2} parent=1 // pred_fallthru
      _
    // Predicated region
    $region6: #{ori_bin_loss.2} parent=1 // pred_check
      _
    $region7: #{ori_bin_loss.2} parent=1 // pred_check_branch
      %18 = sbr.rel (0) target = $region9
    $region8: #{ori_bin_loss.2} parent=1 // pred_region
      %19 = dma.done [#allocation3], 128
    $region9: #{ori_bin_loss.2} parent=1 // pred_fallthru
      _
    %v20 = vld [vmem:[#allocation2] sm:$0xff]
    %v21 = vmul.f32 %v20, %v20
    %vm22 = vcmask 261120
    %v23 = vsel %vm22, %v21, 0.0
    %24 = vadd.xlane.f32.xlu0 %v23
    %v25 = vpop.xlane.xlu0 %24
    %v26 = vadd.f32 %v25, 1e-12
    %v27 = vrsqrt.pop %v26
    %v28 = vmul.f32 %v20, %v27
    %v29 = vpack.c.bf16 %v28, %v28
    %vm30 = vcmask 257024
    %31 = vst.msk [vmem:[%s1] sm:$0xf] %vm30, %v29
    // Predicated region
    $region10: #{ori_bin_loss.2} parent=1 // pred_check
      _
    $region11: #{ori_bin_loss.2} parent=1 // pred_check_branch
      %33 = sbr.rel (0) target = $region13
    $region12: #{ori_bin_loss.2} parent=1 // pred_region
      _
    $region13: #{ori_bin_loss.2} parent=1 // pred_fallthru
      _
    // Predicated region
    $region14: #{ori_bin_loss.2} parent=1 // pred_check
      _
    $region15: #{ori_bin_loss.2} parent=1 // pred_check_branch
      %35 = sbr.rel (0) target = $region17
    $region16: #{ori_bin_loss.2} parent=1 // pred_region
      _
    $region17: #{ori_bin_loss.2} parent=1 // pred_fallthru
      _
    %36 = vsyncpa [#allocation3], 1

// kernel: ori_bin_loss.3
$region0: #{ori_bin_loss.3}
  #allocation0 [shape = 'u32[]', space=smem, size = 0x4, offset = 0x4, fixed_abs, tag = 'smem constant byte address 0x4 - core index']
  #allocation1 [shape = 'u32[144,128]{1,0:T(1,128)}', space=vmem, size = 0x12000, scoped, tag = 'internal scratch']
  %s0 = inlined_call_operand.vmem [shape: bf16[8,32], index: 0, kind: input, shape index: {}]
  %s1 = inlined_call_operand.vmem [shape: bf16[32,8], index: 1, kind: input, shape index: {}]
  %s2 = inlined_call_operand.vmem [shape: s32[8,1], index: 2, kind: input, shape index: {}]
  %s3 = inlined_call_operand.vmem [shape: s32[1,8], index: 3, kind: input, shape index: {}]
  %s4 = inlined_call_operand.vmem [shape: f32[8,1], index: 4, kind: output, shape index: {0}]
  %s5 = inlined_call_operand.vmem [shape: f32[8,1], index: 5, kind: output, shape index: {1}]
  %6 = xla_tuple %s4, %s5
  %s7 = sld [smem:[#allocation0]]
  $region34: #{ori_bin_loss.3} parent=0
    _
  %s9 = ssub.s32 1, %s7
  %s10 = scalar_select 0, %s9, %s7
  // Predicated region
  $region2: #{ori_bin_loss.3} parent=0 // pred_check
    _
  $region3: #{ori_bin_loss.3} parent=0 // pred_check_branch
    %12 = sbr.rel (0) target = $region5
  $region4: #{ori_bin_loss.3} parent=0 // pred_region
    _
  $region5: #{ori_bin_loss.3} parent=0 // pred_fallthru
    _
  // Predicated region
  $region6: #{ori_bin_loss.3} parent=0 // pred_check
    _
  $region7: #{ori_bin_loss.3} parent=0 // pred_check_branch
    %14 = sbr.rel (0) target = $region9
  $region8: #{ori_bin_loss.3} parent=0 // pred_region
    _
  $region9: #{ori_bin_loss.3} parent=0 // pred_fallthru
    _
  // Predicated region
  $region10: #{ori_bin_loss.3} parent=0 // pred_check
    _
  $region11: #{ori_bin_loss.3} parent=0 // pred_check_branch
    %16 = sbr.rel (0) target = $region13
  $region12: #{ori_bin_loss.3} parent=0 // pred_region
    _
  $region13: #{ori_bin_loss.3} parent=0 // pred_fallthru
    _
  // Predicated region
  $region14: #{ori_bin_loss.3} parent=0 // pred_check
    _
  $region15: #{ori_bin_loss.3} parent=0 // pred_check_branch
    %18 = sbr.rel (0) target = $region17
  $region16: #{ori_bin_loss.3} parent=0 // pred_region
    _
  $region17: #{ori_bin_loss.3} parent=0 // pred_fallthru
    _
  %v20 = vld [vmem:[%s0] sm:$0xf]
  %v21 = vld [vmem:[%s1] sm:$0xf]
  %v22 = vld [vmem:[%s1 + $0x4] sm:$0xf]
  %v23 = vld [vmem:[%s1 + $0x8] sm:$0xf]
  %v24 = vld [vmem:[%s1 + $0xc] sm:$0xf]
  %v29 = vunpack.c.l.b16 %v21
  %v30 = vunpack.c.l.b16 %v22
  %v31 = vunpack.c.l.b16 %v23
  %v32 = vunpack.c.l.b16 %v24
  %v33 = vpack.c.b16 %v30, %v29
  %v34 = vpack.c.b16 %v32, %v31
  %vm37 = vcmask 261120
  %v39 = vsel %vm37, %v20, 0
  %41 = vmatprep.subr.bf16.mxu0 0
  %42 = vmatpush1.bf16.msra.mxu0 %v33
  %43 = vmatprep.subr.bf16.mxu0 0
  %44 = vmatpush1.bf16.msra.mxu0 %v34
  %45 = vmatprep.subr.bf16.mxu0 0
  %46 = vmatpush1.bf16.msra.mxu0 0
  %47 = vmatprep.subr.bf16.mxu0 0
  %48 = vmatpush1.bf16.msra.mxu0 0
  %49 = vmatprep.subr.bf16.mxu0 0
  %50 = vmatpush1.bf16.msra.mxu0 0
  %51 = vmatprep.subr.bf16.mxu0 0
  %52 = vmatpush1.bf16.msra.mxu0 0
  %53 = vmatprep.subr.bf16.mxu0 0
  %54 = vmatpush1.bf16.msra.mxu0 0
  %55 = vmatprep.subr.bf16.mxu0 0
  %56 = vmatpush1.bf16.msra.mxu0 0
  %57 = vmatprep.subr.bf16.mxu0 0
  %58 = vmatpush1.bf16.msra.mxu0 0
  %59 = vmatprep.subr.bf16.mxu0 0
  %60 = vmatpush1.bf16.msra.mxu0 0
  %61 = vmatprep.subr.bf16.mxu0 0
  %62 = vmatpush1.bf16.msra.mxu0 0
  %63 = vmatprep.subr.bf16.mxu0 0
  %64 = vmatpush1.bf16.msra.mxu0 0
  %65 = vmatprep.subr.bf16.mxu0 0
  %66 = vmatpush1.bf16.msra.mxu0 0
  %67 = vmatprep.subr.bf16.mxu0 0
  %68 = vmatpush1.bf16.msra.mxu0 0
  %69 = vmatprep.subr.bf16.mxu0 0
  %70 = vmatpush1.bf16.msra.mxu0 0
  %71 = vmatprep.subr.bf16.mxu0 0
  %72 = vmatpush1.bf16.msra.mxu0 0
  %73 = vmatprep.mubr.bf16.mxu0 0
  %74 = vmatmul.mubr.bf16.gmra.mrb[0].mxu0 %v39
  %v75 = vpop.f32.mrb[0].mxu0
  %v76 = vadd.f32 0.0, %v75
  %v77 = vpop.f32.mrb[0].mxu0
  %v78 = vpop.f32.mrb[0].mxu0
  %v79 = vpop.f32.mrb[0].mxu0
  %80 = vdwg.mxu0
  %v81 = vld [vmem:[%s2] sm:$0xff]
  %v82 = vld [vmem:[%s3] sm:$0x1]
  %83 = vset.pattern.permute.xlu0 0
  %84 = vperm.xlu0 %83, %v81
  %v85 = vpop.permute.xlu0 %84
  %v86 = vlaneseq
  %v87 = vshrl.u32 %v86, 7
  %v88 = vsub.s32 0, %v87
  %v89 = vrot.slane %v82, %v88
  %vm90 = vcmp.eq.s32.totalorder %v85, %v89
  %vm91 = vmxor %vm90, 1
  %v92 = vsel %vm90, %v76, 1e+30
  %vm93 = vcmask 64512
  %v94 = vsel %vm93, %v92, inf
  %95 = vmin.xlane.f32.xlu0 %v94
  %v96 = vpop.xlane.xlu0 %95
  %v97 = vsel %vm91, %v76, -1e+30
  %v98 = vsel %vm93, %v97, -inf
  %99 = vmax.xlane.f32.xlu0 %v98
  %v100 = vpop.xlane.xlu0 %99
  %v101 = vsub.f32 %v96, 0.05
  %vm102 = vcmp.gt.f32.partialorder %v76, %v101
  %vm103 = vmand %vm91, %vm102
  %v104 = vsel %vm103, 1, 0
  %v105 = vcvt.s32.f32 %v104
  %v106 = vsel %vm93, %v105, 0.0
  %107 = vadd.xlane.f32.xlu0 %v106
  %v108 = vpop.xlane.xlu0 %107
  %v109 = vsel %vm103, %v76, -1000.0
  %v110 = vsub.f32 %v109, 0.5
  %v111 = vmul.f32 %v110, 20.0
  %v112 = vmul.f32 %v111, 1.442695
  %v113 = vpow.pop %v112
  %v114 = vadd.f32 %v113, 1.0
  %v115 = vlog2.pop %v114
  %v116 = vmul.f32 %v115, 0.6931472
  %v117 = vmul.f32 -0.5, %v113
  %v118 = vadd.f32 %v117, 1.0
  %v119 = vmul.f32 %v118, %v113
  %v120 = vand.u32 2147483647, %v113
  %vm121 = vcmp.lt.f32.partialorder %v120, 0.0004427343
  %v122 = vsel %vm121, %v119, %v116
  %v123 = vsel %vm93, %v122, 0.0
  %124 = vadd.xlane.f32.xlu0 %v123
  %v125 = vpop.xlane.xlu0 %124
  %v126 = vsub.f32 %v100, 0.5
  %v127 = vmul.f32 %v126, 20.0
  %v128 = vmul.f32 %v127, 1.442695
  %v129 = vpow.pop %v128
  %v130 = vadd.f32 %v129, 1.0
  %v131 = vlog2.pop %v130
  %v132 = vmul.f32 %v131, 0.6931472
  %v133 = vmul.f32 -0.5, %v129
  %v134 = vadd.f32 %v133, 1.0
  %v135 = vmul.f32 %v134, %v129
  %v136 = vand.u32 2147483647, %v129
  %vm137 = vcmp.lt.f32.partialorder %v136, 0.0004427343
  %v138 = vsel %vm137, %v135, %v132
  %vm139 = vcmp.gt.f32.partialorder %v108, 0.0
  %v140 = vmax.f32 %v108, 1.0
  %v141 = vrcp.pop %v140
  %v142 = vmul.f32 %v125, %v141
  %v143 = vsel %vm139, %v142, %v138
  %vm144 = vcmp.lt.f32.partialorder %v76, 0.9
  %vm145 = vmand %vm90, %vm144
  %v146 = vsel %vm145, 1, 0
  %v147 = vcvt.s32.f32 %v146
  %v148 = vsel %vm93, %v147, 0.0
  %149 = vadd.xlane.f32.xlu0 %v148
  %v150 = vpop.xlane.xlu0 %149
  %v151 = vsel %vm145, %v76, 1000.0
  %v152 = vsub.f32 %v151, 0.5
  %v153 = vmul.f32 %v152, -2.0
  %v154 = vmul.f32 %v153, 1.442695
  %v155 = vpow.pop %v154
  %v156 = vadd.f32 %v155, 1.0
  %v157 = vlog2.pop %v156
  %v158 = vmul.f32 %v157, 0.6931472
  %v159 = vmul.f32 -0.5, %v155
  %v160 = vadd.f32 %v159, 1.0
  %v161 = vmul.f32 %v160, %v155
  %v162 = vand.u32 2147483647, %v155
  %vm163 = vcmp.lt.f32.partialorder %v162, 0.0004427343
  %v164 = vsel %vm163, %v161, %v158
  %v165 = vsel %vm93, %v164, 0.0
  %166 = vadd.xlane.f32.xlu0 %v165
  %v167 = vpop.xlane.xlu0 %166
  %v168 = vsub.f32 %v96, 0.5
  %v169 = vmul.f32 %v168, -2.0
  %v170 = vmul.f32 %v169, 1.442695
  %v171 = vpow.pop %v170
  %v172 = vadd.f32 %v171, 1.0
  %v173 = vlog2.pop %v172
  %v174 = vmul.f32 %v173, 0.6931472
  %v175 = vmul.f32 -0.5, %v171
  %v176 = vadd.f32 %v175, 1.0
  %v177 = vmul.f32 %v176, %v171
  %v178 = vand.u32 2147483647, %v171
  %vm179 = vcmp.lt.f32.partialorder %v178, 0.0004427343
  %v180 = vsel %vm179, %v177, %v174
  %vm181 = vcmp.gt.f32.partialorder %v150, 0.0
  %v182 = vmax.f32 %v150, 1.0
  %v183 = vrcp.pop %v182
  %v184 = vmul.f32 %v167, %v183
  %v185 = vsel %vm181, %v184, %v180
  %v186 = vadd.f32 %v185, %v143
  %vm187 = vcmask 7168
  %188 = vst.msk [vmem:[%s4] sm:$0xff] %vm187, %v186
  %v189 = vsel %vm139, 0.0, 1.0
  %190 = vst.msk [vmem:[%s5] sm:$0xff] %vm187, %v189
  // Predicated region
  $region18: #{ori_bin_loss.3} parent=0 // pred_check
    _
  $region19: #{ori_bin_loss.3} parent=0 // pred_check_branch
    %192 = sbr.rel (0) target = $region21
  $region20: #{ori_bin_loss.3} parent=0 // pred_region
    _
  $region21: #{ori_bin_loss.3} parent=0 // pred_fallthru
    _
  // Predicated region
  $region22: #{ori_bin_loss.3} parent=0 // pred_check
    _
  $region23: #{ori_bin_loss.3} parent=0 // pred_check_branch
    %194 = sbr.rel (0) target = $region25
  $region24: #{ori_bin_loss.3} parent=0 // pred_region
    _
  $region25: #{ori_bin_loss.3} parent=0 // pred_fallthru
    _
  // Predicated region
  $region26: #{ori_bin_loss.3} parent=0 // pred_check
    _
  $region27: #{ori_bin_loss.3} parent=0 // pred_check_branch
    %196 = sbr.rel (0) target = $region29
  $region28: #{ori_bin_loss.3} parent=0 // pred_region
    _
  $region29: #{ori_bin_loss.3} parent=0 // pred_fallthru
    _
  // Predicated region
  $region30: #{ori_bin_loss.3} parent=0 // pred_check
    _
  $region31: #{ori_bin_loss.3} parent=0 // pred_check_branch
    %198 = sbr.rel (0) target = $region33
  $region32: #{ori_bin_loss.3} parent=0 // pred_region
    _
  $region33: #{ori_bin_loss.3} parent=0 // pred_fallthru
    _

</llo_original>
